<compile_context>
chip_gen: v7x
topology: tpu7x:2x2x1
jax: 0.10.0
libtpu: 0.0.40
codegen_flags: <defaults>
</compile_context>

<pallas_src>
import functools

import jax
import jax.numpy as jnp
from jax.experimental import pallas as pl
from jax.experimental.pallas import tpu as pltpu

LANE = 128  # TPU lane width: batch tiles are multiples of this
SUB = 8     # output rows (n_out=5) padded up to one sublane group


def _roundup(x, m):
    return -(-x // m) * m


def policy_net_kernel(x_ref, w1_ref, b1_ref, w2_ref, b2_ref, o_ref, *, n_out):
    # x_ref: (n_in, TB)  -- batch in lanes
    # w1_ref: (H, n_in), b1_ref: (H, 1), w2_ref: (SUB, H), b2_ref: (SUB, 1)

    # ---- Linear(n_in -> H) + ReLU, transposed: h = W1 @ x_T + b1 ----
    h = jnp.dot(w1_ref[...], x_ref[...], preferred_element_type=jnp.float32)
    h = jnp.maximum(h + b1_ref[...], 0.0)                 # (H, TB)

    # ---- Linear(H -> n_out), rows zero-padded to SUB sublanes ----
    z = jnp.dot(w2_ref[...], h, preferred_element_type=jnp.float32)
    z = z + b2_ref[...]                                   # (SUB, TB)

    # ---- Sigmoid via tanh identity (single EUP op) ----
    s = 0.5 * jnp.tanh(0.5 * z) + 0.5

    # ---- Softmax over the first n_out sublanes ----
    # Sigmoid output is in (0, 1), so exp cannot overflow -> no max-subtract.
    row = jax.lax.broadcasted_iota(jnp.int32, s.shape, dimension=0)
    e = jnp.where(row < n_out, jnp.exp(s), 0.0)           # padded rows -> 0
    denom = jnp.sum(e, axis=0, keepdims=True)             # (1, TB)
    # Exact reciprocal (one per batch element): rows sum to 1 to f32 rounding.
    o_ref[...] = e * (1.0 / denom)


def policy_net_forward(x, w1, b1, w2, b2, *, tb=2048):
    """x: (B, n_in) f32.  Weights in PyTorch layout:
    w1: (H, n_in), b1: (H,), w2: (n_out, H), b2: (n_out,)."""
    B, n_in = x.shape
    hidden = w1.shape[0]
    n_out = w2.shape[0]
    assert n_out <= SUB

    # Pad output features to 8 sublanes (zero rows; masked out of the softmax).
    w2p = jnp.zeros((SUB, hidden), jnp.float32).at[:n_out].set(w2)
    b2p = jnp.zeros((SUB, 1), jnp.float32).at[:n_out, 0].set(b2)
    b1c = b1.reshape(hidden, 1)

    # Batch tile (lanes): multiple of 128; guarantee >=2 grid steps when the
    # batch spans more than one lane tile (keeps both v7x TensorCores busy).
    tb = max(LANE, _roundup(tb, LANE))
    b_lanes = _roundup(B, LANE)
    if tb >= b_lanes and b_lanes > LANE:
        tb = _roundup(b_lanes // 2, LANE)
    tb = min(tb, b_lanes)
    b_pad = _roundup(B, tb)

    # Feature-major input: (n_in, b_pad), batch on the lane axis.
    x_t = jnp.pad(x.T, ((0, 0), (0, b_pad - B)))

    out = pl.pallas_call(
        functools.partial(policy_net_kernel, n_out=n_out),
        out_shape=jax.ShapeDtypeStruct((SUB, b_pad), jnp.float32),
        grid_spec=pltpu.PrefetchScalarGridSpec(
            num_scalar_prefetch=0,
            grid=(b_pad // tb,),
            in_specs=[
                pl.BlockSpec((n_in, tb), lambda i: (0, i)),      # x tiles stream
                pl.BlockSpec((hidden, n_in), lambda i: (0, 0)),  # weights resident
                pl.BlockSpec((hidden, 1), lambda i: (0, 0)),
                pl.BlockSpec((SUB, hidden), lambda i: (0, 0)),
                pl.BlockSpec((SUB, 1), lambda i: (0, 0)),
            ],
            out_specs=pl.BlockSpec((SUB, tb), lambda i: (0, i)),
        ),
        compiler_params=pltpu.CompilerParams(
            dimension_semantics=("parallel",),  # shard batch tiles across TCs
        ),
    )(x_t, w1, b1c, w2p, b2p)

    # Small (n_out, B) slice + transpose back to batch-major.
    return out[:n_out, :B].T


def init_params(key, no_of_inputs=10, no_of_outputs=5, hidden=100):
    # PyTorch Linear default init: U(-1/sqrt(fan_in), 1/sqrt(fan_in)),
    # weights kept in PyTorch (out, in) layout.
    k1, k2, k3, k4 = jax.random.split(key, 4)
    bound1 = 1.0 / jnp.sqrt(jnp.float32(no_of_inputs))
    bound2 = 1.0 / jnp.sqrt(jnp.float32(hidden))
    w1 = jax.random.uniform(k1, (hidden, no_of_inputs), jnp.float32, -bound1, bound1)
    b1 = jax.random.uniform(k2, (hidden,), jnp.float32, -bound1, bound1)
    w2 = jax.random.uniform(k3, (no_of_outputs, hidden), jnp.float32, -bound2, bound2)
    b2 = jax.random.uniform(k4, (no_of_outputs,), jnp.float32, -bound2, bound2)
    return w1, b1, w2, b2


def ref_forward(x, w1, b1, w2, b2):
    # Plain-JAX reference, same math as the PyTorch module.
    h = jnp.maximum(x @ w1.T + b1, 0.0)
    s = jax.nn.sigmoid(h @ w2.T + b2)
    return jax.nn.softmax(s, axis=1)


if __name__ == "__main__":
    key = jax.random.PRNGKey(0)
    k_x1, k_x2, k_p = jax.random.split(key, 3)

    no_of_inputs, no_of_outputs = 10, 5
    w1, b1, w2, b2 = init_params(k_p, no_of_inputs, no_of_outputs)

    # Case 1: small batch, single grid step.
    B1 = 8
    x1 = jax.random.normal(k_x1, (B1, no_of_inputs), jnp.float32)
    y1 = policy_net_forward(x1, w1, b1, w2, b2)
    jax.block_until_ready(y1)
    y1_ref = ref_forward(x1, w1, b1, w2, b2)
    assert y1.shape == (B1, no_of_outputs)
    assert jnp.allclose(y1, y1_ref, atol=1e-3, rtol=1e-3)
    assert jnp.allclose(jnp.sum(y1, axis=1), 1.0, atol=1e-3)

    # Case 2: non-tile-multiple batch with a multi-step parallel grid (tb=128).
    B2 = 200
    x2 = jax.random.normal(k_x2, (B2, no_of_inputs), jnp.float32)
    y2 = policy_net_forward(x2, w1, b1, w2, b2, tb=128)
    jax.block_until_ready(y2)
    y2_ref = ref_forward(x2, w1, b1, w2, b2)
    assert y2.shape == (B2, no_of_outputs)
    assert jnp.allclose(y2, y2_ref, atol=1e-3, rtol=1e-3)
    assert jnp.allclose(jnp.sum(y2, axis=1), 1.0, atol=1e-3)

    print("KERNEL_OK")
</pallas_src>

<mosaic_0001>
module attributes {stable_mosaic.version = 11 : i64} {
  func.func @policy_net_kernel(%arg0: i32, %arg1: memref<10x128xf32, #tpu.memory_space<vmem>>, %arg2: memref<100x10xf32, #tpu.memory_space<vmem>>, %arg3: memref<100x1xf32, #tpu.memory_space<vmem>>, %arg4: memref<8x100xf32, #tpu.memory_space<vmem>>, %arg5: memref<8x1xf32, #tpu.memory_space<vmem>>, %arg6: memref<8x128xf32, #tpu.memory_space<vmem>>) attributes {dimension_semantics = [#tpu.dimension_semantics<parallel>], iteration_bounds = array<i64: 1>, scalar_prefetch = 0 : i64, scratch_operands = 0 : i64, tpu.core_type = #tpu.core_type<tc>, window_params = [{transform_indices = @transform_0, window_bounds = array<i64: 10, 128>}, {pipeline_mode = #tpu.pipeline_mode<synchronous>, transform_indices = @transform_1, window_bounds = array<i64: 100, 10>}, {pipeline_mode = #tpu.pipeline_mode<synchronous>, transform_indices = @transform_2, window_bounds = array<i64: 100, 1>}, {pipeline_mode = #tpu.pipeline_mode<synchronous>, transform_indices = @transform_3, window_bounds = array<i64: 8, 100>}, {pipeline_mode = #tpu.pipeline_mode<synchronous>, transform_indices = @transform_4, window_bounds = array<i64: 8, 1>}, {transform_indices = @transform_5, window_bounds = array<i64: 8, 128>}]} {
    %c0 = arith.constant 0 : index
    %c0_0 = arith.constant 0 : index
    %0 = vector.load %arg2[%c0, %c0_0] : memref<100x10xf32, #tpu.memory_space<vmem>>, vector<100x10xf32>
    %c0_1 = arith.constant 0 : index
    %c0_2 = arith.constant 0 : index
    %1 = vector.load %arg1[%c0_1, %c0_2] : memref<10x128xf32, #tpu.memory_space<vmem>>, vector<10x128xf32>
    %cst = arith.constant dense<0.000000e+00> : vector<100x128xf32>
    %2 = tpu.matmul %0, %1, %cst {dimension_numbers = #tpu.dot_dimension_numbers<[1], [0], [0], [1], [0, 0, 1, 1], [], []>} : vector<100x10xf32>, vector<10x128xf32>, vector<100x128xf32> -> vector<100x128xf32>
    %c0_3 = arith.constant 0 : index
    %c0_4 = arith.constant 0 : index
    %3 = vector.load %arg3[%c0_3, %c0_4] : memref<100x1xf32, #tpu.memory_space<vmem>>, vector<100x1xf32>
    %4 = vector.broadcast %3 : vector<100x1xf32> to vector<100x128xf32>
    %5 = arith.addf %2, %4 : vector<100x128xf32>
    %cst_5 = arith.constant 0.000000e+00 : f32
    %6 = vector.broadcast %cst_5 : f32 to vector<100x128xf32>
    %7 = arith.maximumf %5, %6 : vector<100x128xf32>
    %c0_6 = arith.constant 0 : index
    %c0_7 = arith.constant 0 : index
    %8 = vector.load %arg4[%c0_6, %c0_7] : memref<8x100xf32, #tpu.memory_space<vmem>>, vector<8x100xf32>
    %cst_8 = arith.constant dense<0.000000e+00> : vector<8x128xf32>
    %9 = tpu.matmul %8, %7, %cst_8 {dimension_numbers = #tpu.dot_dimension_numbers<[1], [0], [0], [1], [0, 0, 1, 1], [], []>} : vector<8x100xf32>, vector<100x128xf32>, vector<8x128xf32> -> vector<8x128xf32>
    %c0_9 = arith.constant 0 : index
    %c0_10 = arith.constant 0 : index
    %10 = vector.load %arg5[%c0_9, %c0_10] : memref<8x1xf32, #tpu.memory_space<vmem>>, vector<8x1xf32>
    %11 = vector.broadcast %10 : vector<8x1xf32> to vector<8x128xf32>
    %12 = arith.addf %9, %11 : vector<8x128xf32>
    %cst_11 = arith.constant 5.000000e-01 : f32
    %13 = vector.broadcast %cst_11 : f32 to vector<8x128xf32>
    %14 = arith.mulf %13, %12 : vector<8x128xf32>
    %15 = math.tanh %14 : vector<8x128xf32>
    %cst_12 = arith.constant 5.000000e-01 : f32
    %16 = vector.broadcast %cst_12 : f32 to vector<8x128xf32>
    %17 = arith.mulf %16, %15 : vector<8x128xf32>
    %cst_13 = arith.constant 5.000000e-01 : f32
    %18 = vector.broadcast %cst_13 : f32 to vector<8x128xf32>
    %19 = arith.addf %17, %18 : vector<8x128xf32>
    %20 = tpu.iota {dimensions = array<i32: 0>} : vector<8x128xi32>
    %c5_i32 = arith.constant 5 : i32
    %21 = vector.broadcast %c5_i32 : i32 to vector<8x128xi32>
    %22 = arith.cmpi slt, %20, %21 : vector<8x128xi32>
    %23 = math.exp %19 : vector<8x128xf32>
    %cst_14 = arith.constant 0.000000e+00 : f32
    %24 = vector.broadcast %cst_14 : f32 to vector<8x128xf32>
    %25 = arith.select %22, %23, %24 : vector<8x128xi1>, vector<8x128xf32>
    %cst_15 = arith.constant dense<0.000000e+00> : vector<128xf32>
    %26 = vector.multi_reduction <add>, %25, %cst_15 [0] : vector<8x128xf32> to vector<128xf32>
    %27 = vector.shape_cast %26 : vector<128xf32> to vector<1x128xf32>
    %cst_16 = arith.constant 1.000000e+00 : f32
    %28 = vector.broadcast %cst_16 : f32 to vector<1x128xf32>
    %29 = arith.divf %28, %27 : vector<1x128xf32>
    %30 = vector.broadcast %29 : vector<1x128xf32> to vector<8x128xf32>
    %31 = arith.mulf %25, %30 : vector<8x128xf32>
    %c0_17 = arith.constant 0 : index
    %c0_18 = arith.constant 0 : index
    %32 = vector.load %arg6[%c0_17, %c0_18] : memref<8x128xf32, #tpu.memory_space<vmem>>, vector<8x128xf32>
    tpu.vector_store %arg6[%c0_17, %c0_18], %31 {strides = array<i32>} : memref<8x128xf32, #tpu.memory_space<vmem>>, vector<8x128xf32>,
    return
  }
  func.func @transform_0(%arg0: i32) -> (i32, i32) {
    %c0_i32 = arith.constant 0 : i32
    %c0_i32_0 = arith.constant 0 : i32
    return %c0_i32, %arg0 : i32, i32
  }
  func.func @transform_1(%arg0: i32) -> (i32, i32) {
    %c0_i32 = arith.constant 0 : i32
    %c0_i32_0 = arith.constant 0 : i32
    %c0_i32_1 = arith.constant 0 : i32
    return %c0_i32, %c0_i32_0 : i32, i32
  }
  func.func @transform_2(%arg0: i32) -> (i32, i32) {
    %c0_i32 = arith.constant 0 : i32
    %c0_i32_0 = arith.constant 0 : i32
    %c0_i32_1 = arith.constant 0 : i32
    return %c0_i32, %c0_i32_0 : i32, i32
  }
  func.func @transform_3(%arg0: i32) -> (i32, i32) {
    %c0_i32 = arith.constant 0 : i32
    %c0_i32_0 = arith.constant 0 : i32
    %c0_i32_1 = arith.constant 0 : i32
    return %c0_i32, %c0_i32_0 : i32, i32
  }
  func.func @transform_4(%arg0: i32) -> (i32, i32) {
    %c0_i32 = arith.constant 0 : i32
    %c0_i32_0 = arith.constant 0 : i32
    %c0_i32_1 = arith.constant 0 : i32
    return %c0_i32, %c0_i32_0 : i32, i32
  }
  func.func @transform_5(%arg0: i32) -> (i32, i32) {
    %c0_i32 = arith.constant 0 : i32
    %c0_i32_0 = arith.constant 0 : i32
    return %c0_i32, %arg0 : i32, i32
  }
}

</mosaic_0001>

<llo_original>
// kernel: tpu_custom_call.1
$region0: #{tpu_custom_call.1}
  #allocation0 [shape = 'u32[]', space=smem, size = 0x4, offset = 0x4, fixed_abs, tag = 'smem constant byte address 0x4 - core index']
  #allocation1 [shape = 'u32[144,128]{1,0:T(1,128)}', space=vmem, size = 0x12000, scoped, tag = 'internal scratch']
  %s0 = inlined_call_operand.vmem [shape: f32[10,128], index: 0, kind: input, shape index: {}]
  %s1 = inlined_call_operand.vmem [shape: f32[100,10], index: 1, kind: input, shape index: {}]
  %s2 = inlined_call_operand.vmem [shape: f32[100,1], index: 2, kind: input, shape index: {}]
  %s3 = inlined_call_operand.vmem [shape: f32[8,100], index: 3, kind: input, shape index: {}]
  %s4 = inlined_call_operand.vmem [shape: f32[8,1], index: 4, kind: input, shape index: {}]
  %s5 = inlined_call_operand.hbm [shape: f32[8,128], index: 5, kind: output, shape index: {}]
  %s6 = sld [smem:[#allocation0]]
  $region30: #{tpu_custom_call.1} parent=0
    _
  %s8 = ssub.s32 1, %s6
  %s9 = scalar_select 0, %s8, %s6
  $region1: #{tpu_custom_call.1} parent=0
    #allocation2 [shape = 'u8[4096]{0}', space=vmem, size = 0x1000, scoped, tag = 'output window, operand 0, single buffered']
    #allocation3 [shape = 's32[1]{0}', space=sflag, size = 0x4, scoped, tag = 'scoped memory for tpu_custom_call.1']
    %10 = vsyncpa [#allocation3], 0
    // Predicated region
    $region2: #{tpu_custom_call.1} parent=1 // pred_check
      _
    $region3: #{tpu_custom_call.1} parent=1 // pred_check_branch
      %12 = sbr.rel (0) target = $region5
    $region4: #{tpu_custom_call.1} parent=1 // pred_region
      _
    $region5: #{tpu_custom_call.1} parent=1 // pred_fallthru
      _
    // Predicated region
    $region6: #{tpu_custom_call.1} parent=1 // pred_check
      _
    $region7: #{tpu_custom_call.1} parent=1 // pred_check_branch
      %14 = sbr.rel (0) target = $region9
    $region8: #{tpu_custom_call.1} parent=1 // pred_region
      _
    $region9: #{tpu_custom_call.1} parent=1 // pred_fallthru
      _
    // Predicated region
    $region10: #{tpu_custom_call.1} parent=1 // pred_check
      _
    $region11: #{tpu_custom_call.1} parent=1 // pred_check_branch
      %16 = sbr.rel (0) target = $region13
    $region12: #{tpu_custom_call.1} parent=1 // pred_region
      _
    $region13: #{tpu_custom_call.1} parent=1 // pred_fallthru
      _
    // Predicated region
    $region14: #{tpu_custom_call.1} parent=1 // pred_check
      _
    $region15: #{tpu_custom_call.1} parent=1 // pred_check_branch
      %18 = sbr.rel (0) target = $region17
    $region16: #{tpu_custom_call.1} parent=1 // pred_region
      _
    $region17: #{tpu_custom_call.1} parent=1 // pred_fallthru
      _
    // Predicated region
    $region18: #{tpu_custom_call.1} parent=1 // pred_check
      _
    $region19: #{tpu_custom_call.1} parent=1 // pred_check_branch
      %20 = sbr.rel (0) target = $region21
    $region20: #{tpu_custom_call.1} parent=1 // pred_region
      _
    $region21: #{tpu_custom_call.1} parent=1 // pred_fallthru
      _
    %v21 = vld [vmem:[%s1] sm:$0xff]
    %v22 = vld [vmem:[%s1 + $0x8] sm:$0xff]
    %v23 = vld [vmem:[%s1 + $0x10] sm:$0xff]
    %v24 = vld [vmem:[%s1 + $0x18] sm:$0xff]
    %v25 = vld [vmem:[%s1 + $0x20] sm:$0xff]
    %v26 = vld [vmem:[%s1 + $0x28] sm:$0xff]
    %v27 = vld [vmem:[%s1 + $0x30] sm:$0xff]
    %v28 = vld [vmem:[%s1 + $0x38] sm:$0xff]
    %v29 = vld [vmem:[%s1 + $0x40] sm:$0xff]
    %v30 = vld [vmem:[%s1 + $0x48] sm:$0xff]
    %v31 = vld [vmem:[%s1 + $0x50] sm:$0xff]
    %v32 = vld [vmem:[%s1 + $0x58] sm:$0xff]
    %v33 = vld [vmem:[%s1 + $0x60] sm:$0xf]
    %v34 = vld [vmem:[%s0] sm:$0xff]
    %v35 = vld [vmem:[%s0 + $0x8] sm:$0x3]
    %v36 = vld [vmem:[%s2] sm:$0xff]
    %v37 = vld [vmem:[%s2 + $0x8] sm:$0xff]
    %v38 = vld [vmem:[%s2 + $0x10] sm:$0xff]
    %v39 = vld [vmem:[%s2 + $0x18] sm:$0xff]
    %v40 = vld [vmem:[%s2 + $0x20] sm:$0xff]
    %v41 = vld [vmem:[%s2 + $0x28] sm:$0xff]
    %v42 = vld [vmem:[%s2 + $0x30] sm:$0xff]
    %v43 = vld [vmem:[%s2 + $0x38] sm:$0xff]
    %v44 = vld [vmem:[%s2 + $0x40] sm:$0xff]
    %v45 = vld [vmem:[%s2 + $0x48] sm:$0xff]
    %v46 = vld [vmem:[%s2 + $0x50] sm:$0xff]
    %v47 = vld [vmem:[%s2 + $0x58] sm:$0xff]
    %v48 = vld [vmem:[%s2 + $0x60] sm:$0xf]
    %50 = vset.pattern.permute.xlu0 0
    %51 = vperm.xlu0 %50, %v36
    %v52 = vpop.permute.xlu0 %51
    %55 = vset.pattern.permute.xlu0 0
    %56 = vperm.xlu0 %55, %v37
    %v57 = vpop.permute.xlu0 %56
    %60 = vset.pattern.permute.xlu0 0
    %61 = vperm.xlu0 %60, %v38
    %v62 = vpop.permute.xlu0 %61
    %65 = vset.pattern.permute.xlu0 0
    %66 = vperm.xlu0 %65, %v39
    %v67 = vpop.permute.xlu0 %66
    %70 = vset.pattern.permute.xlu0 0
    %71 = vperm.xlu0 %70, %v40
    %v72 = vpop.permute.xlu0 %71
    %75 = vset.pattern.permute.xlu0 0
    %76 = vperm.xlu0 %75, %v41
    %v77 = vpop.permute.xlu0 %76
    %80 = vset.pattern.permute.xlu0 0
    %81 = vperm.xlu0 %80, %v42
    %v82 = vpop.permute.xlu0 %81
    %85 = vset.pattern.permute.xlu0 0
    %86 = vperm.xlu0 %85, %v43
    %v87 = vpop.permute.xlu0 %86
    %90 = vset.pattern.permute.xlu0 0
    %91 = vperm.xlu0 %90, %v44
    %v92 = vpop.permute.xlu0 %91
    %95 = vset.pattern.permute.xlu0 0
    %96 = vperm.xlu0 %95, %v45
    %v97 = vpop.permute.xlu0 %96
    %100 = vset.pattern.permute.xlu0 0
    %101 = vperm.xlu0 %100, %v46
    %v102 = vpop.permute.xlu0 %101
    %105 = vset.pattern.permute.xlu0 0
    %106 = vperm.xlu0 %105, %v47
    %v107 = vpop.permute.xlu0 %106
    %110 = vset.pattern.permute.xlu0 0
    %111 = vperm.xlu0 %110, %v48
    %v112 = vpop.permute.xlu0 %111
    %vm114 = vcmask 80896
    %v116 = vsel %vm114, %v21, 0
    %v119 = vsel %vm114, %v22, 0
    %v122 = vsel %vm114, %v23, 0
    %v125 = vsel %vm114, %v24, 0
    %v128 = vsel %vm114, %v25, 0
    %v131 = vsel %vm114, %v26, 0
    %v134 = vsel %vm114, %v27, 0
    %v137 = vsel %vm114, %v28, 0
    %v140 = vsel %vm114, %v29, 0
    %v143 = vsel %vm114, %v30, 0
    %v146 = vsel %vm114, %v31, 0
    %v149 = vsel %vm114, %v32, 0
    %v152 = vsel %vm114, %v33, 0
    %vm154 = vcmask 1041408
    %v156 = vsel %vm154, %v35, 0
    %158 = vmatprep.subr.mxu0 0.0
    %159 = vmatpush1.msra.mxu0 %v34
    %160 = vmatprep.subr.mxu0 0.0
    %161 = vmatpush1.msra.mxu0 %v156
    %162 = vmatprep.subr.mxu0 0.0
    %163 = vmatpush1.msra.mxu0 0.0
    %164 = vmatprep.subr.mxu0 0.0
    %165 = vmatpush1.msra.mxu0 0.0
    %166 = vmatprep.subr.mxu0 0.0
    %167 = vmatpush1.msra.mxu0 0.0
    %168 = vmatprep.subr.mxu0 0.0
    %169 = vmatpush1.msra.mxu0 0.0
    %170 = vmatprep.subr.mxu0 0.0
    %171 = vmatpush1.msra.mxu0 0.0
    %172 = vmatprep.subr.mxu0 0.0
    %173 = vmatpush1.msra.mxu0 0.0
    %174 = vmatprep.subr.mxu0 0.0
    %175 = vmatpush1.msra.mxu0 0.0
    %176 = vmatprep.subr.mxu0 0.0
    %177 = vmatpush1.msra.mxu0 0.0
    %178 = vmatprep.subr.mxu0 0.0
    %179 = vmatpush1.msra.mxu0 0.0
    %180 = vmatprep.subr.mxu0 0.0
    %181 = vmatpush1.msra.mxu0 0.0
    %182 = vmatprep.subr.mxu0 0.0
    %183 = vmatpush1.msra.mxu0 0.0
    %184 = vmatprep.subr.mxu0 0.0
    %185 = vmatpush1.msra.mxu0 0.0
    %186 = vmatprep.subr.mxu0 0.0
    %187 = vmatpush1.msra.mxu0 0.0
    %188 = vmatprep.subr.mxu0 0.0
    %189 = vmatpush1.msra.mxu0 0.0
    %190 = vmatprep.subr.mxu0 0.0
    %191 = vmatpush1.msra.mxu0 0.0
    %192 = vmatprep.subr.mxu0 0.0
    %193 = vmatpush1.msra.mxu0 0.0
    %194 = vmatprep.subr.mxu0 0.0
    %195 = vmatpush1.msra.mxu0 0.0
    %196 = vmatprep.subr.mxu0 0.0
    %197 = vmatpush1.msra.mxu0 0.0
    %198 = vmatprep.subr.mxu0 0.0
    %199 = vmatpush1.msra.mxu0 0.0
    %200 = vmatprep.subr.mxu0 0.0
    %201 = vmatpush1.msra.mxu0 0.0
    %202 = vmatprep.subr.mxu0 0.0
    %203 = vmatpush1.msra.mxu0 0.0
    %204 = vmatprep.subr.mxu0 0.0
    %205 = vmatpush1.msra.mxu0 0.0
    %206 = vmatprep.subr.mxu0 0.0
    %207 = vmatpush1.msra.mxu0 0.0
    %208 = vmatprep.subr.mxu0 0.0
    %209 = vmatpush1.msra.mxu0 0.0
    %210 = vmatprep.subr.mxu0 0.0
    %211 = vmatpush1.msra.mxu0 0.0
    %212 = vmatprep.subr.mxu0 0.0
    %213 = vmatpush1.msra.mxu0 0.0
    %214 = vmatprep.subr.mxu0 0.0
    %215 = vmatpush1.msra.mxu0 0.0
    %216 = vmatprep.subr.mxu0 0.0
    %217 = vmatpush1.msra.mxu0 0.0
    %218 = vmatprep.subr.mxu0 0.0
    %219 = vmatpush1.msra.mxu0 0.0
    %220 = vmatprep.subr.mxu0 0.0
    %221 = vmatpush1.msra.mxu0 0.0
    %222 = vmatprep.mubr.f32.mxu0 0.0
    %223 = vmatmul.mubr.f32.gmra.mrb[0].mxu0 %v116
    %v224 = vpop.f32.mrb[0].mxu0
    %v225 = vadd.f32 %v52, %v224
    %v226 = vpop.f32.mrb[0].mxu0
    %227 = vmatprep.mubr.f32.mxu0 0.0
    %228 = vmatmul.mubr.f32.gmra.mrb[0].mxu0 %v119
    %v229 = vpop.f32.mrb[0].mxu0
    %v230 = vadd.f32 %v57, %v229
    %v231 = vpop.f32.mrb[0].mxu0
    %232 = vmatprep.mubr.f32.mxu0 0.0
    %233 = vmatmul.mubr.f32.gmra.mrb[0].mxu0 %v122
    %v234 = vpop.f32.mrb[0].mxu0
    %v235 = vadd.f32 %v62, %v234
    %v236 = vpop.f32.mrb[0].mxu0
    %237 = vmatprep.mubr.f32.mxu0 0.0
    %238 = vmatmul.mubr.f32.gmra.mrb[0].mxu0 %v125
    %v239 = vpop.f32.mrb[0].mxu0
    %v240 = vadd.f32 %v67, %v239
    %v241 = vpop.f32.mrb[0].mxu0
    %242 = vmatprep.mubr.f32.mxu0 0.0
    %243 = vmatmul.mubr.f32.gmra.mrb[0].mxu0 %v128
    %v244 = vpop.f32.mrb[0].mxu0
    %v245 = vadd.f32 %v72, %v244
    %v246 = vpop.f32.mrb[0].mxu0
    %247 = vmatprep.mubr.f32.mxu0 0.0
    %248 = vmatmul.mubr.f32.gmra.mrb[0].mxu0 %v131
    %v249 = vpop.f32.mrb[0].mxu0
    %v250 = vadd.f32 %v77, %v249
    %v251 = vpop.f32.mrb[0].mxu0
    %252 = vmatprep.mubr.f32.mxu0 0.0
    %253 = vmatmul.mubr.f32.gmra.mrb[0].mxu0 %v134
    %v254 = vpop.f32.mrb[0].mxu0
    %v255 = vadd.f32 %v82, %v254
    %v256 = vpop.f32.mrb[0].mxu0
    %257 = vmatprep.mubr.f32.mxu0 0.0
    %258 = vmatmul.mubr.f32.gmra.mrb[0].mxu0 %v137
    %v259 = vpop.f32.mrb[0].mxu0
    %v260 = vadd.f32 %v87, %v259
    %v261 = vpop.f32.mrb[0].mxu0
    %262 = vmatprep.mubr.f32.mxu0 0.0
    %263 = vmatmul.mubr.f32.gmra.mrb[0].mxu0 %v140
    %v264 = vpop.f32.mrb[0].mxu0
    %v265 = vadd.f32 %v92, %v264
    %v266 = vpop.f32.mrb[0].mxu0
    %267 = vmatprep.mubr.f32.mxu0 0.0
    %268 = vmatmul.mubr.f32.gmra.mrb[0].mxu0 %v143
    %v269 = vpop.f32.mrb[0].mxu0
    %v270 = vadd.f32 %v97, %v269
    %v271 = vpop.f32.mrb[0].mxu0
    %272 = vmatprep.mubr.f32.mxu0 0.0
    %273 = vmatmul.mubr.f32.gmra.mrb[0].mxu0 %v146
    %v274 = vpop.f32.mrb[0].mxu0
    %v275 = vadd.f32 %v102, %v274
    %v276 = vpop.f32.mrb[0].mxu0
    %277 = vmatprep.mubr.f32.mxu0 0.0
    %278 = vmatmul.mubr.f32.gmra.mrb[0].mxu0 %v149
    %v279 = vpop.f32.mrb[0].mxu0
    %v280 = vadd.f32 %v107, %v279
    %v281 = vpop.f32.mrb[0].mxu0
    %282 = vmatprep.mubr.f32.mxu0 0.0
    %283 = vmatmul.mubr.f32.gmra.mrb[0].mxu0 %v152
    %v284 = vpop.f32.mrb[0].mxu0
    %v285 = vadd.f32 %v112, %v284
    %v286 = vpop.f32.mrb[0].mxu0
    %287 = vdwg.mxu0
    %v288 = vmax.f32 %v225, 0.0
    %v289 = vmax.f32 %v230, 0.0
    %v290 = vmax.f32 %v235, 0.0
    %v291 = vmax.f32 %v240, 0.0
    %v292 = vmax.f32 %v245, 0.0
    %v293 = vmax.f32 %v250, 0.0
    %v294 = vmax.f32 %v255, 0.0
    %v295 = vmax.f32 %v260, 0.0
    %v296 = vmax.f32 %v265, 0.0
    %v297 = vmax.f32 %v270, 0.0
    %v298 = vmax.f32 %v275, 0.0
    %v299 = vmax.f32 %v280, 0.0
    %v300 = vmax.f32 %v285, 0.0
    %v301 = vld [vmem:[%s3] sm:$0xff]
    %v302 = vld [vmem:[%s4] sm:$0xff]
    %304 = vset.pattern.permute.xlu0 0
    %305 = vperm.xlu0 %304, %v302
    %v306 = vpop.permute.xlu0 %305
    %vm308 = vcmask 818176
    %v310 = vsel %vm308, %v301, 0
    %vm312 = vcmask 1043456
    %v314 = vsel %vm312, %v300, 0
    %316 = vmatprep.subr.mxu0 0.0
    %317 = vmatpush1.msra.mxu0 %v288
    %318 = vmatprep.subr.mxu0 0.0
    %319 = vmatpush1.msra.mxu0 %v289
    %320 = vmatprep.subr.mxu0 0.0
    %321 = vmatpush1.msra.mxu0 %v290
    %322 = vmatprep.subr.mxu0 0.0
    %323 = vmatpush1.msra.mxu0 %v291
    %324 = vmatprep.subr.mxu0 0.0
    %325 = vmatpush1.msra.mxu0 %v292
    %326 = vmatprep.subr.mxu0 0.0
    %327 = vmatpush1.msra.mxu0 %v293
    %328 = vmatprep.subr.mxu0 0.0
    %329 = vmatpush1.msra.mxu0 %v294
    %330 = vmatprep.subr.mxu0 0.0
    %331 = vmatpush1.msra.mxu0 %v295
    %332 = vmatprep.subr.mxu0 0.0
    %333 = vmatpush1.msra.mxu0 %v296
    %334 = vmatprep.subr.mxu0 0.0
    %335 = vmatpush1.msra.mxu0 %v297
    %336 = vmatprep.subr.mxu0 0.0
    %337 = vmatpush1.msra.mxu0 %v298
    %338 = vmatprep.subr.mxu0 0.0
    %339 = vmatpush1.msra.mxu0 %v299
    %340 = vmatprep.subr.mxu0 0.0
    %341 = vmatpush1.msra.mxu0 %v314
    %342 = vmatprep.subr.mxu0 0.0
    %343 = vmatpush1.msra.mxu0 0.0
    %344 = vmatprep.subr.mxu0 0.0
    %345 = vmatpush1.msra.mxu0 0.0
    %346 = vmatprep.subr.mxu0 0.0
    %347 = vmatpush1.msra.mxu0 0.0
    %348 = vmatprep.subr.mxu0 0.0
    %349 = vmatpush1.msra.mxu0 0.0
    %350 = vmatprep.subr.mxu0 0.0
    %351 = vmatpush1.msra.mxu0 0.0
    %352 = vmatprep.subr.mxu0 0.0
    %353 = vmatpush1.msra.mxu0 0.0
    %354 = vmatprep.subr.mxu0 0.0
    %355 = vmatpush1.msra.mxu0 0.0
    %356 = vmatprep.subr.mxu0 0.0
    %357 = vmatpush1.msra.mxu0 0.0
    %358 = vmatprep.subr.mxu0 0.0
    %359 = vmatpush1.msra.mxu0 0.0
    %360 = vmatprep.subr.mxu0 0.0
    %361 = vmatpush1.msra.mxu0 0.0
    %362 = vmatprep.subr.mxu0 0.0
    %363 = vmatpush1.msra.mxu0 0.0
    %364 = vmatprep.subr.mxu0 0.0
    %365 = vmatpush1.msra.mxu0 0.0
    %366 = vmatprep.subr.mxu0 0.0
    %367 = vmatpush1.msra.mxu0 0.0
    %368 = vmatprep.subr.mxu0 0.0
    %369 = vmatpush1.msra.mxu0 0.0
    %370 = vmatprep.subr.mxu0 0.0
    %371 = vmatpush1.msra.mxu0 0.0
    %372 = vmatprep.subr.mxu0 0.0
    %373 = vmatpush1.msra.mxu0 0.0
    %374 = vmatprep.subr.mxu0 0.0
    %375 = vmatpush1.msra.mxu0 0.0
    %376 = vmatprep.subr.mxu0 0.0
    %377 = vmatpush1.msra.mxu0 0.0
    %378 = vmatprep.subr.mxu0 0.0
    %379 = vmatpush1.msra.mxu0 0.0
    %380 = vmatprep.mubr.f32.mxu0 0.0
    %381 = vmatmul.mubr.f32.gmra.mrb[0].mxu0 %v310
    %v382 = vpop.f32.mrb[0].mxu0
    %v383 = vadd.f32 %v306, %v382
    %v384 = vpop.f32.mrb[0].mxu0
    %385 = vdwg.mxu0
    %v386 = vmul.f32 %v383, 0.5
    %v387 = vtanh.pop %v386
    %v388 = vmul.f32 %v387, 0.5
    %v389 = vadd.f32 %v388, 0.5
    %v390 = vlaneseq
    %v391 = vshrl.u32 %v390, 7
    %vm392 = vcmp.lt.s32.totalorder %v391, 5
    %v393 = vmul.f32 %v389, 1.442695
    %v394 = vpow.pop %v393
    %v395 = vsel %vm392, %v394, 0.0
    %v396 = vrot.slane %v395, 4
    %v397 = vadd.f32 %v395, %v396
    %v398 = vrot.slane %v397, 2
    %v399 = vadd.f32 %v397, %v398
    %v400 = vrot.slane %v399, 1
    %v401 = vadd.f32 %v399, %v400
    %v402 = vrcp.pop %v401
    %v403 = vmul.f32 1.0, %v402
    %v404 = vmul.f32 %v395, %v403
    %405 = vst [vmem:[#allocation2] sm:$0xff] %v404
    // Predicated region
    $region22: #{tpu_custom_call.1} parent=1 // pred_check
      _
    $region23: #{tpu_custom_call.1} parent=1 // pred_check_branch
      %407 = sbr.rel (0) target = $region25
    $region24: #{tpu_custom_call.1} parent=1 // pred_region
      %s409 = ssub.s32 128, 128
      %410 = vsyncadd [#allocation3], %s409
      %s412 = sshll.u32 [#allocation2], 4
      %s413 = int_to_ptr.vmem [resolvable:$true] %s412
      %415 = dma.vmem_to_hbm [thread:$0]  %s413, 128, %s5, [#allocation3]
    $region25: #{tpu_custom_call.1} parent=1 // pred_fallthru
      _
    // Predicated region
    $region26: #{tpu_custom_call.1} parent=1 // pred_check
      _
    $region27: #{tpu_custom_call.1} parent=1 // pred_check_branch
      %417 = sbr.rel (0) target = $region29
    $region28: #{tpu_custom_call.1} parent=1 // pred_region
      %418 = dma.done [#allocation3], 128
    $region29: #{tpu_custom_call.1} parent=1 // pred_fallthru
      _
    %419 = vsyncpa [#allocation3], 1

</llo_original>
